<compile_context>
chip_gen: v5e
topology: v5e:2x2
jax: 0.10.0
libtpu: 0.0.40
codegen_flags: <defaults>
</compile_context>

<pallas_src>
import jax
import jax.numpy as jnp
from jax.experimental import pallas as pl
from jax.experimental.pallas import tpu as pltpu

_LANE = 128
_SUBLANE = 8


def _round_up(x, m):
    return ((x + m - 1) // m) * m


def _vmem_budget_bytes():
    """Usable per-call VMEM budget, derived from the TPU generation.

    ~96 MiB on v5e/v6e (128 MiB physical), ~48 MiB on v7x (64 MiB physical);
    falls back to the conservative v7x figure if the query is unavailable.
    """
    cap = 64 * 1024 * 1024
    try:
        cap = int(getattr(pltpu.get_tpu_info(), "vmem_capacity_bytes", cap))
    except Exception:
        pass
    return (cap * 3) // 4


def _pick_vocab_tile(Bp, Ep, Hp, Vp, budget_bytes):
    """Largest 128-multiple divisor of Vp whose working set fits the budget."""
    resident = (2 * Bp * Ep            # x (bf16)
                + 4 * Bp * Hp          # h (f32)
                + 2 * Ep * 3 * Hp      # W_ih^T (bf16)
                + 2 * Hp * 3 * Hp      # W_hh^T (bf16)
                + 2 * 4 * 3 * Hp       # b_ih, b_hh (f32)
                + 4 * Vp               # b_out (f32, fully resident)
                + 4 * Bp * Hp)         # h_new output (f32)
    resident *= 2                      # pessimistic: double-buffer everything
    for t in range(Vp, 0, -_LANE):
        if Vp % t:
            continue
        # W_out tile (up to 3 buffers) + pred tile (2 buffers)
        streamed = 3 * 2 * Hp * t + 2 * 4 * Bp * t
        if resident + streamed <= budget_bytes:
            return t
    return _LANE


def _decoder_kernel(x_ref, h_ref, wih_ref, whh_ref, bih_ref, bhh_ref,
                    bout_ref, wout_ref, pred_ref, hnew_ref):
    """GRU decode step + one vocab tile of the output projection.

    Grid: (Vp // tile_v,), dimension_semantics=("parallel",).  The GRU cell is
    recomputed from resident operands in every grid step, so there is no
    carried dependency across vocab tiles and v7x can shard the vocab axis
    across both TensorCores.  Every step writes the identical h_new value, so
    duplicated writebacks of the resident h_new block are benign.
    """
    j = pl.program_id(0)
    Hp = hnew_ref.shape[-1]
    tile_v = pred_ref.shape[-1]

    x = x_ref[...]                                       # (Bp, Ep) bf16
    h = h_ref[...]                                       # (Bp, Hp) f32
    # Gate slabs are 128-lane aligned: gate g occupies [g*Hp, (g+1)*Hp).
    gi = jnp.dot(x, wih_ref[...],
                 preferred_element_type=jnp.float32) + bih_ref[...]
    gh = jnp.dot(h.astype(whh_ref.dtype), whh_ref[...],
                 preferred_element_type=jnp.float32) + bhh_ref[...]
    r = jax.nn.sigmoid(gi[:, 0:Hp] + gh[:, 0:Hp])
    z = jax.nn.sigmoid(gi[:, Hp:2 * Hp] + gh[:, Hp:2 * Hp])
    n = jnp.tanh(gi[:, 2 * Hp:3 * Hp] + r * gh[:, 2 * Hp:3 * Hp])
    h_new = (1.0 - z) * n + z * h
    hnew_ref[...] = h_new

    # b_out is fully resident; slice the lane range owned by this vocab tile.
    if tile_v == bout_ref.shape[-1]:
        b_out = bout_ref[...]
    else:
        off = pl.multiple_of(j * tile_v, _LANE)
        b_out = bout_ref[:, pl.ds(off, tile_v)]

    pred_ref[...] = (jnp.dot(h_new.astype(wout_ref.dtype), wout_ref[...],
                             preferred_element_type=jnp.float32) + b_out)


def decoder_forward(token_ids, hidden, params, *, out_dim, hid_dim):
    """token_ids: (B,) int32, hidden: (1, B, H) f32 -> (pred (B, V), hidden (1, B, H))."""
    V, H = out_dim, hid_dim
    Ep = params["embedding"].shape[1]
    Hp = params["w_hh_t"].shape[0]
    Vp = params["w_out_t"].shape[1]

    B = token_ids.shape[0]
    Bp = _round_up(B, _SUBLANE)
    # NOTE: the W_out stream is amortized over the batch; callers that batch
    # decode up to B ~ 128 (v5e) / 256 (v6e, v7x) get it nearly free MXU-wise.

    budget = _vmem_budget_bytes()
    tile_v = _pick_vocab_tile(Bp, Ep, Hp, Vp, budget)
    n_tiles = Vp // tile_v

    # Glue: embedding row gather + pad batch / hidden to aligned shapes.
    tok = jnp.pad(token_ids.astype(jnp.int32), (0, Bp - B))
    x = jnp.take(params["embedding"], tok, axis=0)                    # (Bp, Ep) bf16
    h = jnp.pad(hidden[0].astype(jnp.float32),
                ((0, Bp - B), (0, Hp - H)))                           # (Bp, Hp) f32

    resident = lambda j: (0, 0)

    # Deeper buffering on the W_out stream only when the vocab loop is long
    # enough for DMA-issue latency to be exposed.
    wout_kwargs = {"pipeline_mode": pl.Buffered(3)} if n_tiles >= 4 else {}
    wout_spec = pl.BlockSpec((Hp, tile_v), lambda j: (0, j), **wout_kwargs)

    w_bytes = 2 * (params["w_ih_t"].size + params["w_hh_t"].size
                   + params["w_out_t"].size)
    io_bytes = (2 * x.size + 4 * h.size + 4 * Bp * Vp + 4 * Bp * Hp
                + 4 * (params["b_ih"].size + params["b_hh"].size
                       + params["b_out"].size))
    gru_flops = 2 * Bp * (Ep + Hp) * 3 * Hp
    cost = pl.CostEstimate(
        flops=n_tiles * gru_flops + 2 * Bp * Hp * Vp,
        transcendentals=n_tiles * 3 * Bp * Hp,
        bytes_accessed=w_bytes + io_bytes)

    pred_p, hnew_p = pl.pallas_call(
        _decoder_kernel,
        out_shape=(jax.ShapeDtypeStruct((Bp, Vp), jnp.float32),
                   jax.ShapeDtypeStruct((Bp, Hp), jnp.float32)),
        grid_spec=pltpu.PrefetchScalarGridSpec(
            num_scalar_prefetch=0,
            grid=(n_tiles,),
            in_specs=[
                pl.BlockSpec((Bp, Ep), resident),        # x            (resident)
                pl.BlockSpec((Bp, Hp), resident),        # h            (resident)
                pl.BlockSpec((Ep, 3 * Hp), resident),    # W_ih^T       (resident)
                pl.BlockSpec((Hp, 3 * Hp), resident),    # W_hh^T       (resident)
                pl.BlockSpec((1, 3 * Hp), resident),     # b_ih         (resident)
                pl.BlockSpec((1, 3 * Hp), resident),     # b_hh         (resident)
                pl.BlockSpec((1, Vp), resident),         # b_out        (resident, sliced in-kernel)
                wout_spec,                               # W_out^T tile (streamed)
            ],
            out_specs=(pl.BlockSpec((Bp, tile_v), lambda j: (0, j)),   # pred tile
                       pl.BlockSpec((Bp, Hp), resident)),              # h_new (resident)
        ),
        compiler_params=pltpu.CompilerParams(
            dimension_semantics=("parallel",),           # no carried dep across vocab tiles
            vmem_limit_bytes=budget),
        cost_estimate=cost,
    )(x, h,
      params["w_ih_t"], params["w_hh_t"],
      params["b_ih"], params["b_hh"],
      params["b_out"], params["w_out_t"])

    pred = pred_p[:B, :V]
    h_new = hnew_p[:B, :H][None, :, :]
    return pred, h_new


def init_params(key, output_dim, emb_dim, hid_dim, pad_idx=0):
    """PyTorch-equivalent parameters, padded to lane-aligned shapes, weights in bf16."""
    V, E, H = output_dim, emb_dim, hid_dim
    Ep = _round_up(E, _LANE)
    Hp = _round_up(H, _LANE)
    Vp = _round_up(V, _LANE)

    ks = jax.random.split(key, 7)
    scale = 0.1
    f32 = jnp.float32
    emb = scale * jax.random.normal(ks[0], (V, E), f32)
    emb = emb.at[pad_idx].set(0.0)                      # nn.Embedding padding_idx row
    w_ih = scale * jax.random.normal(ks[1], (3 * H, E), f32)   # gates [r, z, n]
    w_hh = scale * jax.random.normal(ks[2], (3 * H, H), f32)
    b_ih = scale * jax.random.normal(ks[3], (3 * H,), f32)
    b_hh = scale * jax.random.normal(ks[4], (3 * H,), f32)
    w_out = scale * jax.random.normal(ks[5], (V, H), f32)
    b_out = scale * jax.random.normal(ks[6], (V,), f32)

    # Pad each gate block to Hp so in-kernel slices are 128-lane aligned.
    def pad_gated_w(w_t, rows, rows_p):                 # (rows, 3H) -> (rows_p, 3Hp)
        out = jnp.zeros((rows_p, 3 * Hp), f32)
        for g in range(3):
            out = out.at[:rows, g * Hp:g * Hp + H].set(w_t[:, g * H:(g + 1) * H])
        return out

    def pad_gated_b(b):                                 # (3H,) -> (1, 3Hp)
        out = jnp.zeros((1, 3 * Hp), f32)
        for g in range(3):
            out = out.at[0, g * Hp:g * Hp + H].set(b[g * H:(g + 1) * H])
        return out

    emb_p = jnp.zeros((V, Ep), f32).at[:, :E].set(emb)
    w_ih_t_p = pad_gated_w(w_ih.T, E, Ep)
    w_hh_t_p = pad_gated_w(w_hh.T, H, Hp)
    w_out_t_p = jnp.zeros((Hp, Vp), f32).at[:H, :V].set(w_out.T)
    b_out_p = jnp.zeros((1, Vp), f32).at[0, :V].set(b_out)

    return {
        "embedding": emb_p.astype(jnp.bfloat16),        # (V, Ep)
        "w_ih_t": w_ih_t_p.astype(jnp.bfloat16),        # (Ep, 3Hp)
        "w_hh_t": w_hh_t_p.astype(jnp.bfloat16),        # (Hp, 3Hp)
        "b_ih": pad_gated_b(b_ih),                      # (1, 3Hp) f32
        "b_hh": pad_gated_b(b_hh),                      # (1, 3Hp) f32
        "w_out_t": w_out_t_p.astype(jnp.bfloat16),      # (Hp, Vp)
        "b_out": b_out_p,                               # (1, Vp) f32
    }


def _reference(token_ids, hidden, params, *, out_dim, hid_dim):
    """Pure-JAX reference using the same padded bf16 parameters / same math."""
    V, H = out_dim, hid_dim
    Hp = params["w_hh_t"].shape[0]
    x = jnp.take(params["embedding"], token_ids, axis=0)
    h = jnp.pad(hidden[0].astype(jnp.float32), ((0, 0), (0, Hp - H)))
    gi = jnp.dot(x, params["w_ih_t"],
                 preferred_element_type=jnp.float32) + params["b_ih"]
    gh = jnp.dot(h.astype(jnp.bfloat16), params["w_hh_t"],
                 preferred_element_type=jnp.float32) + params["b_hh"]
    r = jax.nn.sigmoid(gi[:, :Hp] + gh[:, :Hp])
    z = jax.nn.sigmoid(gi[:, Hp:2 * Hp] + gh[:, Hp:2 * Hp])
    n = jnp.tanh(gi[:, 2 * Hp:] + r * gh[:, 2 * Hp:])
    h_new = (1.0 - z) * n + z * h
    pred = (jnp.dot(h_new.astype(jnp.bfloat16), params["w_out_t"],
                    preferred_element_type=jnp.float32) + params["b_out"])
    return pred[:, :V], h_new[None, :, :H]


if __name__ == "__main__":
    output_dim = 300   # target vocab (pads to Vp=384 -> tile_v=384, grid=(1,))
    emb_dim = 48       # pads to Ep=128
    hid_dim = 96       # pads to Hp=128
    batch = 4          # pads to Bp=8

    key = jax.random.PRNGKey(0)
    k_p, k_tok, k_hid = jax.random.split(key, 3)
    params = init_params(k_p, output_dim, emb_dim, hid_dim, pad_idx=0)

    token_ids = jax.random.randint(k_tok, (batch,), 0, output_dim, dtype=jnp.int32)
    hidden = jax.random.normal(k_hid, (1, batch, hid_dim), jnp.float32)

    fwd = jax.jit(decoder_forward, static_argnames=("out_dim", "hid_dim"))
    pred, h_new = fwd(token_ids, hidden, params,
                      out_dim=output_dim, hid_dim=hid_dim)
    jax.block_until_ready((pred, h_new))

    ref_pred, ref_h = _reference(token_ids, hidden, params,
                                 out_dim=output_dim, hid_dim=hid_dim)
    assert pred.shape == (batch, output_dim)
    assert h_new.shape == (1, batch, hid_dim)
    assert jnp.allclose(pred, ref_pred, atol=2e-3, rtol=2e-3), "prediction mismatch"
    assert jnp.allclose(h_new, ref_h, atol=2e-3, rtol=2e-3), "hidden mismatch"

    print("KERNEL_OK")
</pallas_src>

<mosaic_0001>
module attributes {stable_mosaic.version = 11 : i64} {
  func.func @_decoder_kernel(%arg0: i32, %arg1: memref<8x128xbf16, #tpu.memory_space<vmem>>, %arg2: memref<8x128xf32, #tpu.memory_space<vmem>>, %arg3: memref<128x384xbf16, #tpu.memory_space<vmem>>, %arg4: memref<128x384xbf16, #tpu.memory_space<vmem>>, %arg5: memref<1x384xf32, #tpu.memory_space<vmem>>, %arg6: memref<1x384xf32, #tpu.memory_space<vmem>>, %arg7: memref<1x384xf32, #tpu.memory_space<vmem>>, %arg8: memref<128x384xbf16, #tpu.memory_space<vmem>>, %arg9: memref<8x384xf32, #tpu.memory_space<vmem>>, %arg10: memref<8x128xf32, #tpu.memory_space<vmem>>) attributes {dimension_semantics = [#tpu.dimension_semantics<parallel>], iteration_bounds = array<i64: 1>, scalar_prefetch = 0 : i64, scratch_operands = 0 : i64, tpu.core_type = #tpu.core_type<tc>, window_params = [{pipeline_mode = #tpu.pipeline_mode<synchronous>, transform_indices = @transform_0, window_bounds = array<i64: 8, 128>}, {pipeline_mode = #tpu.pipeline_mode<synchronous>, transform_indices = @transform_1, window_bounds = array<i64: 8, 128>}, {pipeline_mode = #tpu.pipeline_mode<synchronous>, transform_indices = @transform_2, window_bounds = array<i64: 128, 384>}, {pipeline_mode = #tpu.pipeline_mode<synchronous>, transform_indices = @transform_3, window_bounds = array<i64: 128, 384>}, {pipeline_mode = #tpu.pipeline_mode<synchronous>, transform_indices = @transform_4, window_bounds = array<i64: 1, 384>}, {pipeline_mode = #tpu.pipeline_mode<synchronous>, transform_indices = @transform_5, window_bounds = array<i64: 1, 384>}, {pipeline_mode = #tpu.pipeline_mode<synchronous>, transform_indices = @transform_6, window_bounds = array<i64: 1, 384>}, {transform_indices = @transform_7, window_bounds = array<i64: 128, 384>}, {transform_indices = @transform_8, window_bounds = array<i64: 8, 384>}, {pipeline_mode = #tpu.pipeline_mode<synchronous>, transform_indices = @transform_9, window_bounds = array<i64: 8, 128>}]} {
    %c0 = arith.constant 0 : index
    %c0_0 = arith.constant 0 : index
    %0 = vector.load %arg1[%c0, %c0_0] : memref<8x128xbf16, #tpu.memory_space<vmem>>, vector<8x128xbf16>
    %c0_1 = arith.constant 0 : index
    %c0_2 = arith.constant 0 : index
    %1 = vector.load %arg2[%c0_1, %c0_2] : memref<8x128xf32, #tpu.memory_space<vmem>>, vector<8x128xf32>
    %c0_3 = arith.constant 0 : index
    %c0_4 = arith.constant 0 : index
    %2 = vector.load %arg3[%c0_3, %c0_4] : memref<128x384xbf16, #tpu.memory_space<vmem>>, vector<128x384xbf16>
    %cst = arith.constant dense<0.000000e+00> : vector<8x384xf32>
    %3 = tpu.matmul %0, %2, %cst {dimension_numbers = #tpu.dot_dimension_numbers<[1], [0], [0], [1], [0, 0, 1, 1], [], []>} : vector<8x128xbf16>, vector<128x384xbf16>, vector<8x384xf32> -> vector<8x384xf32>
    %c0_5 = arith.constant 0 : index
    %c0_6 = arith.constant 0 : index
    %4 = vector.load %arg5[%c0_5, %c0_6] : memref<1x384xf32, #tpu.memory_space<vmem>>, vector<1x384xf32>
    %5 = vector.broadcast %4 : vector<1x384xf32> to vector<8x384xf32>
    %6 = arith.addf %3, %5 : vector<8x384xf32>
    %7 = arith.truncf %1 : vector<8x128xf32> to vector<8x128xbf16>
    %c0_7 = arith.constant 0 : index
    %c0_8 = arith.constant 0 : index
    %8 = vector.load %arg4[%c0_7, %c0_8] : memref<128x384xbf16, #tpu.memory_space<vmem>>, vector<128x384xbf16>
    %cst_9 = arith.constant dense<0.000000e+00> : vector<8x384xf32>
    %9 = tpu.matmul %7, %8, %cst_9 {dimension_numbers = #tpu.dot_dimension_numbers<[1], [0], [0], [1], [0, 0, 1, 1], [], []>} : vector<8x128xbf16>, vector<128x384xbf16>, vector<8x384xf32> -> vector<8x384xf32>
    %c0_10 = arith.constant 0 : index
    %c0_11 = arith.constant 0 : index
    %10 = vector.load %arg6[%c0_10, %c0_11] : memref<1x384xf32, #tpu.memory_space<vmem>>, vector<1x384xf32>
    %11 = vector.broadcast %10 : vector<1x384xf32> to vector<8x384xf32>
    %12 = arith.addf %9, %11 : vector<8x384xf32>
    %13 = vector.extract_strided_slice %6 {offsets = [0, 0], sizes = [8, 128], strides = [1, 1]} : vector<8x384xf32> to vector<8x128xf32>
    %14 = vector.extract_strided_slice %12 {offsets = [0, 0], sizes = [8, 128], strides = [1, 1]} : vector<8x384xf32> to vector<8x128xf32>
    %15 = arith.addf %13, %14 : vector<8x128xf32>
    %16 = arith.negf %15 : vector<8x128xf32>
    %17 = math.exp %16 : vector<8x128xf32>
    %cst_12 = arith.constant 1.000000e+00 : f32
    %18 = vector.broadcast %cst_12 : f32 to vector<8x128xf32>
    %19 = arith.addf %18, %17 : vector<8x128xf32>
    %20 = arith.divf %18, %19 : vector<8x128xf32>
    %21 = vector.extract_strided_slice %6 {offsets = [0, 128], sizes = [8, 128], strides = [1, 1]} : vector<8x384xf32> to vector<8x128xf32>
    %22 = vector.extract_strided_slice %12 {offsets = [0, 128], sizes = [8, 128], strides = [1, 1]} : vector<8x384xf32> to vector<8x128xf32>
    %23 = arith.addf %21, %22 : vector<8x128xf32>
    %24 = arith.negf %23 : vector<8x128xf32>
    %25 = math.exp %24 : vector<8x128xf32>
    %cst_13 = arith.constant 1.000000e+00 : f32
    %26 = vector.broadcast %cst_13 : f32 to vector<8x128xf32>
    %27 = arith.addf %26, %25 : vector<8x128xf32>
    %28 = arith.divf %26, %27 : vector<8x128xf32>
    %29 = vector.extract_strided_slice %6 {offsets = [0, 256], sizes = [8, 128], strides = [1, 1]} : vector<8x384xf32> to vector<8x128xf32>
    %30 = vector.extract_strided_slice %12 {offsets = [0, 256], sizes = [8, 128], strides = [1, 1]} : vector<8x384xf32> to vector<8x128xf32>
    %31 = arith.mulf %20, %30 : vector<8x128xf32>
    %32 = arith.addf %29, %31 : vector<8x128xf32>
    %33 = math.tanh %32 : vector<8x128xf32>
    %cst_14 = arith.constant 1.000000e+00 : f32
    %34 = vector.broadcast %cst_14 : f32 to vector<8x128xf32>
    %35 = arith.subf %34, %28 : vector<8x128xf32>
    %36 = arith.mulf %35, %33 : vector<8x128xf32>
    %37 = arith.mulf %28, %1 : vector<8x128xf32>
    %38 = arith.addf %36, %37 : vector<8x128xf32>
    %c0_15 = arith.constant 0 : index
    %c0_16 = arith.constant 0 : index
    %39 = vector.load %arg10[%c0_15, %c0_16] : memref<8x128xf32, #tpu.memory_space<vmem>>, vector<8x128xf32>
    tpu.vector_store %arg10[%c0_15, %c0_16], %38 {strides = array<i32>} : memref<8x128xf32, #tpu.memory_space<vmem>>, vector<8x128xf32>,
    %c0_17 = arith.constant 0 : index
    %c0_18 = arith.constant 0 : index
    %40 = vector.load %arg7[%c0_17, %c0_18] : memref<1x384xf32, #tpu.memory_space<vmem>>, vector<1x384xf32>
    %41 = arith.truncf %38 : vector<8x128xf32> to vector<8x128xbf16>
    %c0_19 = arith.constant 0 : index
    %c0_20 = arith.constant 0 : index
    %42 = vector.load %arg8[%c0_19, %c0_20] : memref<128x384xbf16, #tpu.memory_space<vmem>>, vector<128x384xbf16>
    %cst_21 = arith.constant dense<0.000000e+00> : vector<8x384xf32>
    %43 = tpu.matmul %41, %42, %cst_21 {dimension_numbers = #tpu.dot_dimension_numbers<[1], [0], [0], [1], [0, 0, 1, 1], [], []>} : vector<8x128xbf16>, vector<128x384xbf16>, vector<8x384xf32> -> vector<8x384xf32>
    %44 = vector.broadcast %40 : vector<1x384xf32> to vector<8x384xf32>
    %45 = arith.addf %43, %44 : vector<8x384xf32>
    %c0_22 = arith.constant 0 : index
    %c0_23 = arith.constant 0 : index
    %46 = vector.load %arg9[%c0_22, %c0_23] : memref<8x384xf32, #tpu.memory_space<vmem>>, vector<8x384xf32>
    tpu.vector_store %arg9[%c0_22, %c0_23], %45 {strides = array<i32>} : memref<8x384xf32, #tpu.memory_space<vmem>>, vector<8x384xf32>,
    return
  }
  func.func @transform_0(%arg0: i32) -> (i32, i32) {
    %c0_i32 = arith.constant 0 : i32
    %c0_i32_0 = arith.constant 0 : i32
    %c0_i32_1 = arith.constant 0 : i32
    return %c0_i32, %c0_i32_0 : i32, i32
  }
  func.func @transform_1(%arg0: i32) -> (i32, i32) {
    %c0_i32 = arith.constant 0 : i32
    %c0_i32_0 = arith.constant 0 : i32
    %c0_i32_1 = arith.constant 0 : i32
    return %c0_i32, %c0_i32_0 : i32, i32
  }
  func.func @transform_2(%arg0: i32) -> (i32, i32) {
    %c0_i32 = arith.constant 0 : i32
    %c0_i32_0 = arith.constant 0 : i32
    %c0_i32_1 = arith.constant 0 : i32
    return %c0_i32, %c0_i32_0 : i32, i32
  }
  func.func @transform_3(%arg0: i32) -> (i32, i32) {
    %c0_i32 = arith.constant 0 : i32
    %c0_i32_0 = arith.constant 0 : i32
    %c0_i32_1 = arith.constant 0 : i32
    return %c0_i32, %c0_i32_0 : i32, i32
  }
  func.func @transform_4(%arg0: i32) -> (i32, i32) {
    %c0_i32 = arith.constant 0 : i32
    %c0_i32_0 = arith.constant 0 : i32
    %c0_i32_1 = arith.constant 0 : i32
    return %c0_i32, %c0_i32_0 : i32, i32
  }
  func.func @transform_5(%arg0: i32) -> (i32, i32) {
    %c0_i32 = arith.constant 0 : i32
    %c0_i32_0 = arith.constant 0 : i32
    %c0_i32_1 = arith.constant 0 : i32
    return %c0_i32, %c0_i32_0 : i32, i32
  }
  func.func @transform_6(%arg0: i32) -> (i32, i32) {
    %c0_i32 = arith.constant 0 : i32
    %c0_i32_0 = arith.constant 0 : i32
    %c0_i32_1 = arith.constant 0 : i32
    return %c0_i32, %c0_i32_0 : i32, i32
  }
  func.func @transform_7(%arg0: i32) -> (i32, i32) {
    %c0_i32 = arith.constant 0 : i32
    %c0_i32_0 = arith.constant 0 : i32
    return %c0_i32, %arg0 : i32, i32
  }
  func.func @transform_8(%arg0: i32) -> (i32, i32) {
    %c0_i32 = arith.constant 0 : i32
    %c0_i32_0 = arith.constant 0 : i32
    return %c0_i32, %arg0 : i32, i32
  }
  func.func @transform_9(%arg0: i32) -> (i32, i32) {
    %c0_i32 = arith.constant 0 : i32
    %c0_i32_0 = arith.constant 0 : i32
    %c0_i32_1 = arith.constant 0 : i32
    return %c0_i32, %c0_i32_0 : i32, i32
  }
}

</mosaic_0001>

<llo_original>
// kernel: decoder_forward.1
$region0: #{decoder_forward.1}
  #allocation0 [shape = 'u32[]', space=smem, size = 0x4, offset = 0x4, fixed_abs, tag = 'smem constant byte address 0x4 - core index']
  #allocation1 [shape = 'u32[72,128]{1,0:T(1,128)}', space=vmem, size = 0x9000, scoped, tag = 'internal scratch']
  %s0 = inlined_call_operand.vmem [shape: bf16[8,128], index: 0, kind: input, shape index: {}]
  %s1 = inlined_call_operand.vmem [shape: f32[8,128], index: 1, kind: input, shape index: {}]
  %s2 = inlined_call_operand.hbm [shape: bf16[128,384], index: 2, kind: input, shape index: {}]
  %s3 = inlined_call_operand.hbm [shape: bf16[128,384], index: 3, kind: input, shape index: {}]
  %s4 = inlined_call_operand.vmem [shape: f32[1,384], index: 4, kind: input, shape index: {}]
  %s5 = inlined_call_operand.vmem [shape: f32[1,384], index: 5, kind: input, shape index: {}]
  %s6 = inlined_call_operand.vmem [shape: f32[1,384], index: 6, kind: input, shape index: {}]
  %s7 = inlined_call_operand.hbm [shape: bf16[128,384], index: 7, kind: input, shape index: {}]
  %s8 = inlined_call_operand.vmem [shape: f32[8,384], index: 8, kind: output, shape index: {0}]
  %s9 = inlined_call_operand.vmem [shape: f32[8,128], index: 9, kind: output, shape index: {1}]
  %10 = xla_tuple %s8, %s9
  %s11 = sld [smem:[#allocation0]]
  $region62: #{decoder_forward.1} parent=0
    _
  %s13 = ssub.s32 1, %s11
  %s14 = scalar_select 0, %s13, %s11
  $region1: #{decoder_forward.1} parent=0
    #allocation2 [shape = 'u8[98304]{0}', space=vmem, size = 0x18000, scoped, tag = 'input window, operand 2, single buffered']
    #allocation3 [shape = 's32[1]{0}', space=sflag, size = 0x4, scoped, tag = 'scoped memory for decoder_forward.1']
    #allocation4 [shape = 'u8[98304]{0}', space=vmem, size = 0x18000, scoped, tag = 'input window, operand 3, single buffered']
    #allocation5 [shape = 's32[1]{0}', space=sflag, size = 0x4, scoped, tag = 'scoped memory for decoder_forward.1']
    #allocation6 [shape = 'u8[98304]{0}', space=vmem, size = 0x18000, scoped, tag = 'input window, operand 7, single buffered']
    %15 = vsyncpa [#allocation3], 0
    %16 = vsyncpa [#allocation5], 0
    // Predicated region
    $region2: #{decoder_forward.1} parent=1 // pred_check
      _
    $region3: #{decoder_forward.1} parent=1 // pred_check_branch
      %18 = sbr.rel (0) target = $region5
    $region4: #{decoder_forward.1} parent=1 // pred_region
      _
    $region5: #{decoder_forward.1} parent=1 // pred_fallthru
      _
    // Predicated region
    $region6: #{decoder_forward.1} parent=1 // pred_check
      _
    $region7: #{decoder_forward.1} parent=1 // pred_check_branch
      %20 = sbr.rel (0) target = $region9
    $region8: #{decoder_forward.1} parent=1 // pred_region
      _
    $region9: #{decoder_forward.1} parent=1 // pred_fallthru
      _
    // Predicated region
    $region10: #{decoder_forward.1} parent=1 // pred_check
      _
    $region11: #{decoder_forward.1} parent=1 // pred_check_branch
      %22 = sbr.rel (0) target = $region13
    $region12: #{decoder_forward.1} parent=1 // pred_region
      %24 = vsyncadd [#allocation3], 0
      %s25 = sshll.u32 %s2, 4
      %s26 = int_to_ptr.hbm [resolvable:$true] %s25
      %s27 = sshll.u32 [#allocation2], 4
      %s28 = int_to_ptr.vmem [resolvable:$true] %s27
      %33 = dma.hbm_to_vmem [thread:$0]  %s26, 3072, %s28, [#allocation3], 192, 192, 12
    $region13: #{decoder_forward.1} parent=1 // pred_fallthru
      _
    // Predicated region
    $region14: #{decoder_forward.1} parent=1 // pred_check
      _
    $region15: #{decoder_forward.1} parent=1 // pred_check_branch
      %35 = sbr.rel (0) target = $region17
    $region16: #{decoder_forward.1} parent=1 // pred_region
      %37 = vsyncadd [#allocation5], 0
      %s38 = sshll.u32 %s3, 4
      %s39 = int_to_ptr.hbm [resolvable:$true] %s38
      %s40 = sshll.u32 [#allocation4], 4
      %s41 = int_to_ptr.vmem [resolvable:$true] %s40
      %46 = dma.hbm_to_vmem [thread:$0]  %s39, 3072, %s41, [#allocation5], 192, 192, 12
    $region17: #{decoder_forward.1} parent=1 // pred_fallthru
      _
    // Predicated region
    $region18: #{decoder_forward.1} parent=1 // pred_check
      _
    $region19: #{decoder_forward.1} parent=1 // pred_check_branch
      %48 = sbr.rel (0) target = $region21
    $region20: #{decoder_forward.1} parent=1 // pred_region
      _
    $region21: #{decoder_forward.1} parent=1 // pred_fallthru
      _
    // Predicated region
    $region22: #{decoder_forward.1} parent=1 // pred_check
      _
    $region23: #{decoder_forward.1} parent=1 // pred_check_branch
      %50 = sbr.rel (0) target = $region25
    $region24: #{decoder_forward.1} parent=1 // pred_region
      _
    $region25: #{decoder_forward.1} parent=1 // pred_fallthru
      _
    // Predicated region
    $region26: #{decoder_forward.1} parent=1 // pred_check
      _
    $region27: #{decoder_forward.1} parent=1 // pred_check_branch
      %52 = sbr.rel (0) target = $region29
    $region28: #{decoder_forward.1} parent=1 // pred_region
      _
    $region29: #{decoder_forward.1} parent=1 // pred_fallthru
      _
    // Predicated region
    $region30: #{decoder_forward.1} parent=1 // pred_check
      _
    $region31: #{decoder_forward.1} parent=1 // pred_check_branch
      %54 = sbr.rel (0) target = $region33
    $region32: #{decoder_forward.1} parent=1 // pred_region
      %56 = vsyncadd [#allocation5], 0
      %s57 = sshll.u32 %s7, 4
      %s58 = int_to_ptr.hbm [resolvable:$true] %s57
      %s59 = sshll.u32 [#allocation6], 4
      %s60 = int_to_ptr.vmem [resolvable:$true] %s59
      %65 = dma.hbm_to_vmem [thread:$0]  %s58, 3072, %s60, [#allocation5], 192, 192, 12
    $region33: #{decoder_forward.1} parent=1 // pred_fallthru
      _
    // Predicated region
    $region34: #{decoder_forward.1} parent=1 // pred_check
      _
    $region35: #{decoder_forward.1} parent=1 // pred_check_branch
      %67 = sbr.rel (0) target = $region37
    $region36: #{decoder_forward.1} parent=1 // pred_region
      %69 = dma.done [#allocation3], 3072
    $region37: #{decoder_forward.1} parent=1 // pred_fallthru
      _
    // Predicated region
    $region38: #{decoder_forward.1} parent=1 // pred_check
      _
    $region39: #{decoder_forward.1} parent=1 // pred_check_branch
      %71 = sbr.rel (0) target = $region41
    $region40: #{decoder_forward.1} parent=1 // pred_region
      %73 = dma.done [#allocation5], 3072
    $region41: #{decoder_forward.1} parent=1 // pred_fallthru
      _
    // Predicated region
    $region42: #{decoder_forward.1} parent=1 // pred_check
      _
    $region43: #{decoder_forward.1} parent=1 // pred_check_branch
      %75 = sbr.rel (0) target = $region45
    $region44: #{decoder_forward.1} parent=1 // pred_region
      %77 = dma.done [#allocation5], 3072
    $region45: #{decoder_forward.1} parent=1 // pred_fallthru
      _
    %v78 = vld [vmem:[%s0] sm:$0xf]
    %v79 = vld [vmem:[%s1] sm:$0xff]
    %v80 = vld [vmem:[#allocation2] sm:$0xff]
    %v81 = vld [vmem:[#allocation2 + $0x8] sm:$0xf]
    %v82 = vld [vmem:[#allocation2 + $0xc] sm:$0xff]
    %v83 = vld [vmem:[#allocation2 + $0x14] sm:$0xf]
    %v84 = vld [vmem:[#allocation2 + $0x18] sm:$0xff]
    %v85 = vld [vmem:[#allocation2 + $0x20] sm:$0xf]
    %v86 = vld [vmem:[#allocation2 + $0x24] sm:$0xff]
    %v87 = vld [vmem:[#allocation2 + $0x2c] sm:$0xf]
    %v88 = vld [vmem:[#allocation2 + $0x30] sm:$0xff]
    %v89 = vld [vmem:[#allocation2 + $0x38] sm:$0xf]
    %v90 = vld [vmem:[#allocation2 + $0x3c] sm:$0xff]
    %v91 = vld [vmem:[#allocation2 + $0x44] sm:$0xf]
    %v92 = vld [vmem:[#allocation2 + $0x48] sm:$0xff]
    %v93 = vld [vmem:[#allocation2 + $0x50] sm:$0xf]
    %v94 = vld [vmem:[#allocation2 + $0x54] sm:$0xff]
    %v95 = vld [vmem:[#allocation2 + $0x5c] sm:$0xf]
    %v96 = vld [vmem:[#allocation2 + $0x60] sm:$0xff]
    %v97 = vld [vmem:[#allocation2 + $0x68] sm:$0xf]
    %v98 = vld [vmem:[#allocation2 + $0x6c] sm:$0xff]
    %v99 = vld [vmem:[#allocation2 + $0x74] sm:$0xf]
    %v100 = vld [vmem:[#allocation2 + $0x78] sm:$0xff]
    %v101 = vld [vmem:[#allocation2 + $0x80] sm:$0xf]
    %v102 = vld [vmem:[#allocation2 + $0x84] sm:$0xff]
    %v103 = vld [vmem:[#allocation2 + $0x8c] sm:$0xf]
    %v104 = vld [vmem:[#allocation2 + $0x90] sm:$0xff]
    %v105 = vld [vmem:[#allocation2 + $0x98] sm:$0xf]
    %v106 = vld [vmem:[#allocation2 + $0x9c] sm:$0xff]
    %v107 = vld [vmem:[#allocation2 + $0xa4] sm:$0xf]
    %v108 = vld [vmem:[#allocation2 + $0xa8] sm:$0xff]
    %v109 = vld [vmem:[#allocation2 + $0xb0] sm:$0xf]
    %v110 = vld [vmem:[#allocation2 + $0xb4] sm:$0xff]
    %v111 = vld [vmem:[#allocation2 + $0xbc] sm:$0xf]
    %v112 = vld [vmem:[%s4] sm:$0x7]
    %v114 = vperm.slane %v112, 0
    %v115 = vperm.slane %v112, 1
    %v116 = vperm.slane %v112, 2
    %v152 = vunpack.c.l.b16 %v80
    %v153 = vunpack.c.h.b16 %v80
    %v154 = vunpack.c.l.b16 %v81
    %v155 = vunpack.c.l.b16 %v82
    %v156 = vunpack.c.h.b16 %v82
    %v157 = vunpack.c.l.b16 %v83
    %v158 = vunpack.c.l.b16 %v84
    %v159 = vunpack.c.h.b16 %v84
    %v160 = vunpack.c.l.b16 %v85
    %v161 = vunpack.c.l.b16 %v86
    %v162 = vunpack.c.h.b16 %v86
    %v163 = vunpack.c.l.b16 %v87
    %v164 = vunpack.c.l.b16 %v88
    %v165 = vunpack.c.h.b16 %v88
    %v166 = vunpack.c.l.b16 %v89
    %v167 = vunpack.c.l.b16 %v90
    %v168 = vunpack.c.h.b16 %v90
    %v169 = vunpack.c.l.b16 %v91
    %v170 = vunpack.c.l.b16 %v92
    %v171 = vunpack.c.h.b16 %v92
    %v172 = vunpack.c.l.b16 %v93
    %v173 = vunpack.c.l.b16 %v94
    %v174 = vunpack.c.h.b16 %v94
    %v175 = vunpack.c.l.b16 %v95
    %v176 = vunpack.c.l.b16 %v96
    %v177 = vunpack.c.h.b16 %v96
    %v178 = vunpack.c.l.b16 %v97
    %v179 = vunpack.c.l.b16 %v98
    %v180 = vunpack.c.h.b16 %v98
    %v181 = vunpack.c.l.b16 %v99
    %v182 = vunpack.c.l.b16 %v100
    %v183 = vunpack.c.h.b16 %v100
    %v184 = vunpack.c.l.b16 %v101
    %v185 = vunpack.c.l.b16 %v102
    %v186 = vunpack.c.h.b16 %v102
    %v187 = vunpack.c.l.b16 %v103
    %v188 = vunpack.c.l.b16 %v104
    %v189 = vunpack.c.h.b16 %v104
    %v190 = vunpack.c.l.b16 %v105
    %v191 = vunpack.c.l.b16 %v106
    %v192 = vunpack.c.h.b16 %v106
    %v193 = vunpack.c.l.b16 %v107
    %v194 = vunpack.c.l.b16 %v108
    %v195 = vunpack.c.h.b16 %v108
    %v196 = vunpack.c.l.b16 %v109
    %v197 = vunpack.c.l.b16 %v110
    %v198 = vunpack.c.h.b16 %v110
    %v199 = vunpack.c.l.b16 %v111
    %v200 = vpack.c.b16 %v155, %v152
    %v201 = vpack.c.b16 %v156, %v153
    %v202 = vpack.c.b16 %v157, %v154
    %v203 = vpack.c.b16 %v161, %v158
    %v204 = vpack.c.b16 %v162, %v159
    %v205 = vpack.c.b16 %v163, %v160
    %v206 = vpack.c.b16 %v167, %v164
    %v207 = vpack.c.b16 %v168, %v165
    %v208 = vpack.c.b16 %v169, %v166
    %v209 = vpack.c.b16 %v173, %v170
    %v210 = vpack.c.b16 %v174, %v171
    %v211 = vpack.c.b16 %v175, %v172
    %v212 = vpack.c.b16 %v179, %v176
    %v213 = vpack.c.b16 %v180, %v177
    %v214 = vpack.c.b16 %v181, %v178
    %v215 = vpack.c.b16 %v185, %v182
    %v216 = vpack.c.b16 %v186, %v183
    %v217 = vpack.c.b16 %v187, %v184
    %v218 = vpack.c.b16 %v191, %v188
    %v219 = vpack.c.b16 %v192, %v189
    %v220 = vpack.c.b16 %v193, %v190
    %v221 = vpack.c.b16 %v197, %v194
    %v222 = vpack.c.b16 %v198, %v195
    %v223 = vpack.c.b16 %v199, %v196
    %248 = vmatpush.bf16.msra.mxu0 %v221
    %249 = vmatpush.bf16.msra.mxu0 %v218
    %250 = vmatpush.bf16.msra.mxu0 %v215
    %251 = vmatpush.bf16.msra.mxu0 %v212
    %252 = vmatpush.bf16.msra.mxu0 %v209
    %253 = vmatpush.bf16.msra.mxu0 %v206
    %254 = vmatpush.bf16.msra.mxu0 %v203
    %255 = vmatpush.bf16.msra.mxu0 %v200
    %256 = vmatmul.bf16.gmra.mxu0 %v78
    %v257 = vpop.f32.mrf.mxu0
    %v258 = vadd.f32 %v114, %v257
    %v259 = vpop.f32.mrf.mxu0
    %260 = vdwg.mxu0
    %261 = vmatpush.bf16.msra.mxu0 %v222
    %262 = vmatpush.bf16.msra.mxu0 %v219
    %263 = vmatpush.bf16.msra.mxu0 %v216
    %264 = vmatpush.bf16.msra.mxu0 %v213
    %265 = vmatpush.bf16.msra.mxu0 %v210
    %266 = vmatpush.bf16.msra.mxu0 %v207
    %267 = vmatpush.bf16.msra.mxu0 %v204
    %268 = vmatpush.bf16.msra.mxu0 %v201
    %269 = vmatmul.bf16.gmra.mxu0 %v78
    %v270 = vpop.f32.mrf.mxu0
    %v271 = vadd.f32 %v115, %v270
    %v272 = vpop.f32.mrf.mxu0
    %273 = vdwg.mxu0
    %274 = vmatpush.bf16.msra.mxu0 %v223
    %275 = vmatpush.bf16.msra.mxu0 %v220
    %276 = vmatpush.bf16.msra.mxu0 %v217
    %277 = vmatpush.bf16.msra.mxu0 %v214
    %278 = vmatpush.bf16.msra.mxu0 %v211
    %279 = vmatpush.bf16.msra.mxu0 %v208
    %280 = vmatpush.bf16.msra.mxu0 %v205
    %281 = vmatpush.bf16.msra.mxu0 %v202
    %282 = vmatmul.bf16.gmra.mxu0 %v78
    %v283 = vpop.f32.mrf.mxu0
    %v284 = vadd.f32 %v116, %v283
    %v285 = vpop.f32.mrf.mxu0
    %286 = vdwg.mxu0
    %v287 = vpack.c.bf16 %v79, %v79
    %v288 = vld [vmem:[#allocation4] sm:$0xff]
    %v289 = vld [vmem:[#allocation4 + $0x8] sm:$0xf]
    %v290 = vld [vmem:[#allocation4 + $0xc] sm:$0xff]
    %v291 = vld [vmem:[#allocation4 + $0x14] sm:$0xf]
    %v292 = vld [vmem:[#allocation4 + $0x18] sm:$0xff]
    %v293 = vld [vmem:[#allocation4 + $0x20] sm:$0xf]
    %v294 = vld [vmem:[#allocation4 + $0x24] sm:$0xff]
    %v295 = vld [vmem:[#allocation4 + $0x2c] sm:$0xf]
    %v296 = vld [vmem:[#allocation4 + $0x30] sm:$0xff]
    %v297 = vld [vmem:[#allocation4 + $0x38] sm:$0xf]
    %v298 = vld [vmem:[#allocation4 + $0x3c] sm:$0xff]
    %v299 = vld [vmem:[#allocation4 + $0x44] sm:$0xf]
    %v300 = vld [vmem:[#allocation4 + $0x48] sm:$0xff]
    %v301 = vld [vmem:[#allocation4 + $0x50] sm:$0xf]
    %v302 = vld [vmem:[#allocation4 + $0x54] sm:$0xff]
    %v303 = vld [vmem:[#allocation4 + $0x5c] sm:$0xf]
    %v304 = vld [vmem:[#allocation4 + $0x60] sm:$0xff]
    %v305 = vld [vmem:[#allocation4 + $0x68] sm:$0xf]
    %v306 = vld [vmem:[#allocation4 + $0x6c] sm:$0xff]
    %v307 = vld [vmem:[#allocation4 + $0x74] sm:$0xf]
    %v308 = vld [vmem:[#allocation4 + $0x78] sm:$0xff]
    %v309 = vld [vmem:[#allocation4 + $0x80] sm:$0xf]
    %v310 = vld [vmem:[#allocation4 + $0x84] sm:$0xff]
    %v311 = vld [vmem:[#allocation4 + $0x8c] sm:$0xf]
    %v312 = vld [vmem:[#allocation4 + $0x90] sm:$0xff]
    %v313 = vld [vmem:[#allocation4 + $0x98] sm:$0xf]
    %v314 = vld [vmem:[#allocation4 + $0x9c] sm:$0xff]
    %v315 = vld [vmem:[#allocation4 + $0xa4] sm:$0xf]
    %v316 = vld [vmem:[#allocation4 + $0xa8] sm:$0xff]
    %v317 = vld [vmem:[#allocation4 + $0xb0] sm:$0xf]
    %v318 = vld [vmem:[#allocation4 + $0xb4] sm:$0xff]
    %v319 = vld [vmem:[#allocation4 + $0xbc] sm:$0xf]
    %v320 = vld [vmem:[%s5] sm:$0x7]
    %v322 = vperm.slane %v320, 0
    %v323 = vperm.slane %v320, 1
    %v324 = vperm.slane %v320, 2
    %v360 = vunpack.c.l.b16 %v288
    %v361 = vunpack.c.h.b16 %v288
    %v362 = vunpack.c.l.b16 %v289
    %v363 = vunpack.c.l.b16 %v290
    %v364 = vunpack.c.h.b16 %v290
    %v365 = vunpack.c.l.b16 %v291
    %v366 = vunpack.c.l.b16 %v292
    %v367 = vunpack.c.h.b16 %v292
    %v368 = vunpack.c.l.b16 %v293
    %v369 = vunpack.c.l.b16 %v294
    %v370 = vunpack.c.h.b16 %v294
    %v371 = vunpack.c.l.b16 %v295
    %v372 = vunpack.c.l.b16 %v296
    %v373 = vunpack.c.h.b16 %v296
    %v374 = vunpack.c.l.b16 %v297
    %v375 = vunpack.c.l.b16 %v298
    %v376 = vunpack.c.h.b16 %v298
    %v377 = vunpack.c.l.b16 %v299
    %v378 = vunpack.c.l.b16 %v300
    %v379 = vunpack.c.h.b16 %v300
    %v380 = vunpack.c.l.b16 %v301
    %v381 = vunpack.c.l.b16 %v302
    %v382 = vunpack.c.h.b16 %v302
    %v383 = vunpack.c.l.b16 %v303
    %v384 = vunpack.c.l.b16 %v304
    %v385 = vunpack.c.h.b16 %v304
    %v386 = vunpack.c.l.b16 %v305
    %v387 = vunpack.c.l.b16 %v306
    %v388 = vunpack.c.h.b16 %v306
    %v389 = vunpack.c.l.b16 %v307
    %v390 = vunpack.c.l.b16 %v308
    %v391 = vunpack.c.h.b16 %v308
    %v392 = vunpack.c.l.b16 %v309
    %v393 = vunpack.c.l.b16 %v310
    %v394 = vunpack.c.h.b16 %v310
    %v395 = vunpack.c.l.b16 %v311
    %v396 = vunpack.c.l.b16 %v312
    %v397 = vunpack.c.h.b16 %v312
    %v398 = vunpack.c.l.b16 %v313
    %v399 = vunpack.c.l.b16 %v314
    %v400 = vunpack.c.h.b16 %v314
    %v401 = vunpack.c.l.b16 %v315
    %v402 = vunpack.c.l.b16 %v316
    %v403 = vunpack.c.h.b16 %v316
    %v404 = vunpack.c.l.b16 %v317
    %v405 = vunpack.c.l.b16 %v318
    %v406 = vunpack.c.h.b16 %v318
    %v407 = vunpack.c.l.b16 %v319
    %v408 = vpack.c.b16 %v363, %v360
    %v409 = vpack.c.b16 %v364, %v361
    %v410 = vpack.c.b16 %v365, %v362
    %v411 = vpack.c.b16 %v369, %v366
    %v412 = vpack.c.b16 %v370, %v367
    %v413 = vpack.c.b16 %v371, %v368
    %v414 = vpack.c.b16 %v375, %v372
    %v415 = vpack.c.b16 %v376, %v373
    %v416 = vpack.c.b16 %v377, %v374
    %v417 = vpack.c.b16 %v381, %v378
    %v418 = vpack.c.b16 %v382, %v379
    %v419 = vpack.c.b16 %v383, %v380
    %v420 = vpack.c.b16 %v387, %v384
    %v421 = vpack.c.b16 %v388, %v385
    %v422 = vpack.c.b16 %v389, %v386
    %v423 = vpack.c.b16 %v393, %v390
    %v424 = vpack.c.b16 %v394, %v391
    %v425 = vpack.c.b16 %v395, %v392
    %v426 = vpack.c.b16 %v399, %v396
    %v427 = vpack.c.b16 %v400, %v397
    %v428 = vpack.c.b16 %v401, %v398
    %v429 = vpack.c.b16 %v405, %v402
    %v430 = vpack.c.b16 %v406, %v403
    %v431 = vpack.c.b16 %v407, %v404
    %456 = vmatpush.bf16.msra.mxu0 %v429
    %457 = vmatpush.bf16.msra.mxu0 %v426
    %458 = vmatpush.bf16.msra.mxu0 %v423
    %459 = vmatpush.bf16.msra.mxu0 %v420
    %460 = vmatpush.bf16.msra.mxu0 %v417
    %461 = vmatpush.bf16.msra.mxu0 %v414
    %462 = vmatpush.bf16.msra.mxu0 %v411
    %463 = vmatpush.bf16.msra.mxu0 %v408
    %464 = vmatmul.bf16.gmra.mxu0 %v287
    %v465 = vpop.f32.mrf.mxu0
    %v466 = vadd.f32 %v322, %v465
    %v467 = vpop.f32.mrf.mxu0
    %468 = vdwg.mxu0
    %469 = vmatpush.bf16.msra.mxu0 %v430
    %470 = vmatpush.bf16.msra.mxu0 %v427
    %471 = vmatpush.bf16.msra.mxu0 %v424
    %472 = vmatpush.bf16.msra.mxu0 %v421
    %473 = vmatpush.bf16.msra.mxu0 %v418
    %474 = vmatpush.bf16.msra.mxu0 %v415
    %475 = vmatpush.bf16.msra.mxu0 %v412
    %476 = vmatpush.bf16.msra.mxu0 %v409
    %477 = vmatmul.bf16.gmra.mxu0 %v287
    %v478 = vpop.f32.mrf.mxu0
    %v479 = vadd.f32 %v323, %v478
    %v480 = vpop.f32.mrf.mxu0
    %481 = vdwg.mxu0
    %482 = vmatpush.bf16.msra.mxu0 %v431
    %483 = vmatpush.bf16.msra.mxu0 %v428
    %484 = vmatpush.bf16.msra.mxu0 %v425
    %485 = vmatpush.bf16.msra.mxu0 %v422
    %486 = vmatpush.bf16.msra.mxu0 %v419
    %487 = vmatpush.bf16.msra.mxu0 %v416
    %488 = vmatpush.bf16.msra.mxu0 %v413
    %489 = vmatpush.bf16.msra.mxu0 %v410
    %490 = vmatmul.bf16.gmra.mxu0 %v287
    %v491 = vpop.f32.mrf.mxu0
    %v492 = vadd.f32 %v324, %v491
    %v493 = vpop.f32.mrf.mxu0
    %494 = vdwg.mxu0
    %v495 = vadd.f32 %v258, %v466
    %v496 = vxor.u32 %v495, 2147483648
    %v497 = vmul.f32 %v496, 1.442695
    %v498 = vpow.pop %v497
    %v499 = vadd.f32 %v498, 1.0
    %v500 = vrcp.pop %v499
    %v501 = vmul.f32 %v499, %v500
    %v502 = vsub.f32 1.0, %v501
    %v503 = vmul.f32 %v500, %v502
    %v504 = vadd.f32 %v500, %v503
    %vm505 = vweird.f32 %v499
    %vm506 = vweird.f32 %v500
    %vm507 = vmor %vm505, %vm506
    %v508 = vsel %vm507, %v500, %v504
    %v509 = vand.u32 2147483647, %v499
    %vm510 = vcmp.eq.f32.partialorder %v509, 8.507059e+37
    %v511 = vand.u32 %v499, 2147483648
    %v512 = vor.u32 1.1754944e-38, %v511
    %v513 = vsel %vm510, %v512, %v508
    %v514 = vmul.f32 1.0, %v513
    %v515 = vadd.f32 %v271, %v479
    %v516 = vxor.u32 %v515, 2147483648
    %v517 = vmul.f32 %v516, 1.442695
    %v518 = vpow.pop %v517
    %v519 = vadd.f32 %v518, 1.0
    %v520 = vrcp.pop %v519
    %v521 = vmul.f32 %v519, %v520
    %v522 = vsub.f32 1.0, %v521
    %v523 = vmul.f32 %v520, %v522
    %v524 = vadd.f32 %v520, %v523
    %vm525 = vweird.f32 %v519
    %vm526 = vweird.f32 %v520
    %vm527 = vmor %vm525, %vm526
    %v528 = vsel %vm527, %v520, %v524
    %v529 = vand.u32 2147483647, %v519
    %vm530 = vcmp.eq.f32.partialorder %v529, 8.507059e+37
    %v531 = vand.u32 %v519, 2147483648
    %v532 = vor.u32 1.1754944e-38, %v531
    %v533 = vsel %vm530, %v532, %v528
    %v534 = vmul.f32 1.0, %v533
    %v535 = vmul.f32 %v514, %v492
    %v536 = vadd.f32 %v284, %v535
    %v537 = vtanh.pop %v536
    %v538 = vsub.f32 1.0, %v534
    %v539 = vmul.f32 %v538, %v537
    %v540 = vmul.f32 %v534, %v79
    %v541 = vadd.f32 %v539, %v540
    %542 = vst [vmem:[%s9] sm:$0xff] %v541
    %v543 = vld [vmem:[%s6] sm:$0x7]
    %v544 = vpack.c.bf16 %v541, %v541
    %v545 = vld [vmem:[#allocation6] sm:$0xff]
    %v546 = vld [vmem:[#allocation6 + $0x8] sm:$0xf]
    %v547 = vld [vmem:[#allocation6 + $0xc] sm:$0xff]
    %v548 = vld [vmem:[#allocation6 + $0x14] sm:$0xf]
    %v549 = vld [vmem:[#allocation6 + $0x18] sm:$0xff]
    %v550 = vld [vmem:[#allocation6 + $0x20] sm:$0xf]
    %v551 = vld [vmem:[#allocation6 + $0x24] sm:$0xff]
    %v552 = vld [vmem:[#allocation6 + $0x2c] sm:$0xf]
    %v553 = vld [vmem:[#allocation6 + $0x30] sm:$0xff]
    %v554 = vld [vmem:[#allocation6 + $0x38] sm:$0xf]
    %v555 = vld [vmem:[#allocation6 + $0x3c] sm:$0xff]
    %v556 = vld [vmem:[#allocation6 + $0x44] sm:$0xf]
    %v557 = vld [vmem:[#allocation6 + $0x48] sm:$0xff]
    %v558 = vld [vmem:[#allocation6 + $0x50] sm:$0xf]
    %v559 = vld [vmem:[#allocation6 + $0x54] sm:$0xff]
    %v560 = vld [vmem:[#allocation6 + $0x5c] sm:$0xf]
    %v561 = vld [vmem:[#allocation6 + $0x60] sm:$0xff]
    %v562 = vld [vmem:[#allocation6 + $0x68] sm:$0xf]
    %v563 = vld [vmem:[#allocation6 + $0x6c] sm:$0xff]
    %v564 = vld [vmem:[#allocation6 + $0x74] sm:$0xf]
    %v565 = vld [vmem:[#allocation6 + $0x78] sm:$0xff]
    %v566 = vld [vmem:[#allocation6 + $0x80] sm:$0xf]
    %v567 = vld [vmem:[#allocation6 + $0x84] sm:$0xff]
    %v568 = vld [vmem:[#allocation6 + $0x8c] sm:$0xf]
    %v569 = vld [vmem:[#allocation6 + $0x90] sm:$0xff]
    %v570 = vld [vmem:[#allocation6 + $0x98] sm:$0xf]
    %v571 = vld [vmem:[#allocation6 + $0x9c] sm:$0xff]
    %v572 = vld [vmem:[#allocation6 + $0xa4] sm:$0xf]
    %v573 = vld [vmem:[#allocation6 + $0xa8] sm:$0xff]
    %v574 = vld [vmem:[#allocation6 + $0xb0] sm:$0xf]
    %v575 = vld [vmem:[#allocation6 + $0xb4] sm:$0xff]
    %v576 = vld [vmem:[#allocation6 + $0xbc] sm:$0xf]
    %v578 = vperm.slane %v543, 0
    %v579 = vperm.slane %v543, 1
    %v580 = vperm.slane %v543, 2
    %v616 = vunpack.c.l.b16 %v545
    %v617 = vunpack.c.h.b16 %v545
    %v618 = vunpack.c.l.b16 %v546
    %v619 = vunpack.c.l.b16 %v547
    %v620 = vunpack.c.h.b16 %v547
    %v621 = vunpack.c.l.b16 %v548
    %v622 = vunpack.c.l.b16 %v549
    %v623 = vunpack.c.h.b16 %v549
    %v624 = vunpack.c.l.b16 %v550
    %v625 = vunpack.c.l.b16 %v551
    %v626 = vunpack.c.h.b16 %v551
    %v627 = vunpack.c.l.b16 %v552
    %v628 = vunpack.c.l.b16 %v553
    %v629 = vunpack.c.h.b16 %v553
    %v630 = vunpack.c.l.b16 %v554
    %v631 = vunpack.c.l.b16 %v555
    %v632 = vunpack.c.h.b16 %v555
    %v633 = vunpack.c.l.b16 %v556
    %v634 = vunpack.c.l.b16 %v557
    %v635 = vunpack.c.h.b16 %v557
    %v636 = vunpack.c.l.b16 %v558
    %v637 = vunpack.c.l.b16 %v559
    %v638 = vunpack.c.h.b16 %v559
    %v639 = vunpack.c.l.b16 %v560
    %v640 = vunpack.c.l.b16 %v561
    %v641 = vunpack.c.h.b16 %v561
    %v642 = vunpack.c.l.b16 %v562
    %v643 = vunpack.c.l.b16 %v563
    %v644 = vunpack.c.h.b16 %v563
    %v645 = vunpack.c.l.b16 %v564
    %v646 = vunpack.c.l.b16 %v565
    %v647 = vunpack.c.h.b16 %v565
    %v648 = vunpack.c.l.b16 %v566
    %v649 = vunpack.c.l.b16 %v567
    %v650 = vunpack.c.h.b16 %v567
    %v651 = vunpack.c.l.b16 %v568
    %v652 = vunpack.c.l.b16 %v569
    %v653 = vunpack.c.h.b16 %v569
    %v654 = vunpack.c.l.b16 %v570
    %v655 = vunpack.c.l.b16 %v571
    %v656 = vunpack.c.h.b16 %v571
    %v657 = vunpack.c.l.b16 %v572
    %v658 = vunpack.c.l.b16 %v573
    %v659 = vunpack.c.h.b16 %v573
    %v660 = vunpack.c.l.b16 %v574
    %v661 = vunpack.c.l.b16 %v575
    %v662 = vunpack.c.h.b16 %v575
    %v663 = vunpack.c.l.b16 %v576
    %v664 = vpack.c.b16 %v619, %v616
    %v665 = vpack.c.b16 %v620, %v617
    %v666 = vpack.c.b16 %v621, %v618
    %v667 = vpack.c.b16 %v625, %v622
    %v668 = vpack.c.b16 %v626, %v623
    %v669 = vpack.c.b16 %v627, %v624
    %v670 = vpack.c.b16 %v631, %v628
    %v671 = vpack.c.b16 %v632, %v629
    %v672 = vpack.c.b16 %v633, %v630
    %v673 = vpack.c.b16 %v637, %v634
    %v674 = vpack.c.b16 %v638, %v635
    %v675 = vpack.c.b16 %v639, %v636
    %v676 = vpack.c.b16 %v643, %v640
    %v677 = vpack.c.b16 %v644, %v641
    %v678 = vpack.c.b16 %v645, %v642
    %v679 = vpack.c.b16 %v649, %v646
    %v680 = vpack.c.b16 %v650, %v647
    %v681 = vpack.c.b16 %v651, %v648
    %v682 = vpack.c.b16 %v655, %v652
    %v683 = vpack.c.b16 %v656, %v653
    %v684 = vpack.c.b16 %v657, %v654
    %v685 = vpack.c.b16 %v661, %v658
    %v686 = vpack.c.b16 %v662, %v659
    %v687 = vpack.c.b16 %v663, %v660
    %712 = vmatpush.bf16.msra.mxu0 %v685
    %713 = vmatpush.bf16.msra.mxu0 %v682
    %714 = vmatpush.bf16.msra.mxu0 %v679
    %715 = vmatpush.bf16.msra.mxu0 %v676
    %716 = vmatpush.bf16.msra.mxu0 %v673
    %717 = vmatpush.bf16.msra.mxu0 %v670
    %718 = vmatpush.bf16.msra.mxu0 %v667
    %719 = vmatpush.bf16.msra.mxu0 %v664
    %720 = vmatmul.bf16.gmra.mxu0 %v544
    %v721 = vpop.f32.mrf.mxu0
    %v722 = vadd.f32 %v578, %v721
    %v723 = vpop.f32.mrf.mxu0
    %724 = vdwg.mxu0
    %725 = vmatpush.bf16.msra.mxu0 %v686
    %726 = vmatpush.bf16.msra.mxu0 %v683
    %727 = vmatpush.bf16.msra.mxu0 %v680
    %728 = vmatpush.bf16.msra.mxu0 %v677
    %729 = vmatpush.bf16.msra.mxu0 %v674
    %730 = vmatpush.bf16.msra.mxu0 %v671
    %731 = vmatpush.bf16.msra.mxu0 %v668
    %732 = vmatpush.bf16.msra.mxu0 %v665
    %733 = vmatmul.bf16.gmra.mxu0 %v544
    %v734 = vpop.f32.mrf.mxu0
    %v735 = vadd.f32 %v579, %v734
    %v736 = vpop.f32.mrf.mxu0
    %737 = vdwg.mxu0
    %738 = vmatpush.bf16.msra.mxu0 %v687
    %739 = vmatpush.bf16.msra.mxu0 %v684
    %740 = vmatpush.bf16.msra.mxu0 %v681
    %741 = vmatpush.bf16.msra.mxu0 %v678
    %742 = vmatpush.bf16.msra.mxu0 %v675
    %743 = vmatpush.bf16.msra.mxu0 %v672
    %744 = vmatpush.bf16.msra.mxu0 %v669
    %745 = vmatpush.bf16.msra.mxu0 %v666
    %746 = vmatmul.bf16.gmra.mxu0 %v544
    %v747 = vpop.f32.mrf.mxu0
    %v748 = vadd.f32 %v580, %v747
    %v749 = vpop.f32.mrf.mxu0
    %750 = vdwg.mxu0
    %751 = vst [vmem:[%s8] sm:$0xff] %v722
    %752 = vst [vmem:[%s8 + $0x8] sm:$0xff] %v735
    %753 = vst [vmem:[%s8 + $0x10] sm:$0xff] %v748
    // Predicated region
    $region46: #{decoder_forward.1} parent=1 // pred_check
      _
    $region47: #{decoder_forward.1} parent=1 // pred_check_branch
      %755 = sbr.rel (0) target = $region49
    $region48: #{decoder_forward.1} parent=1 // pred_region
      _
    $region49: #{decoder_forward.1} parent=1 // pred_fallthru
      _
    // Predicated region
    $region50: #{decoder_forward.1} parent=1 // pred_check
      _
    $region51: #{decoder_forward.1} parent=1 // pred_check_branch
      %757 = sbr.rel (0) target = $region53
    $region52: #{decoder_forward.1} parent=1 // pred_region
      _
    $region53: #{decoder_forward.1} parent=1 // pred_fallthru
      _
    // Predicated region
    $region54: #{decoder_forward.1} parent=1 // pred_check
      _
    $region55: #{decoder_forward.1} parent=1 // pred_check_branch
      %759 = sbr.rel (0) target = $region57
    $region56: #{decoder_forward.1} parent=1 // pred_region
      _
    $region57: #{decoder_forward.1} parent=1 // pred_fallthru
      _
    // Predicated region
    $region58: #{decoder_forward.1} parent=1 // pred_check
      _
    $region59: #{decoder_forward.1} parent=1 // pred_check_branch
      %761 = sbr.rel (0) target = $region61
    $region60: #{decoder_forward.1} parent=1 // pred_region
      _
    $region61: #{decoder_forward.1} parent=1 // pred_fallthru
      _
    %762 = vsyncpa [#allocation3], 1
    %763 = vsyncpa [#allocation5], 1

</llo_original>
